<compile_context>
chip_gen: v6e
topology: v6e:2x2x1
jax: 0.10.0
libtpu: 0.0.40
codegen_flags: <defaults>
</compile_context>

<pallas_src>
import math

import jax
import jax.numpy as jnp
from jax.experimental import pallas as pl
from jax.experimental.pallas import tpu as pltpu

_LANE = 128  # TPU vreg lane width


def _gmf_kernel(hidden_ref, types_ref, out_ref):
    # Elementwise product of the current VMEM tiles (VPU op).
    out_ref[...] = hidden_ref[...] * types_ref[...]


def _round_up(x: int, m: int) -> int:
    return ((x + m - 1) // m) * m


def gmf_forward(hidden: jax.Array, types: jax.Array, *, row_tile: int = 2048) -> jax.Array:
    """Pallas implementation of GMF.forward (torch.mul semantics, equal shapes)."""
    assert hidden.shape == types.shape, "hidden and types must have equal shapes"
    assert hidden.dtype == types.dtype, "hidden and types must have equal dtypes"

    orig_shape = hidden.shape
    dtype = hidden.dtype
    total = math.prod(orig_shape) if orig_shape else 1

    itemsize = jnp.dtype(dtype).itemsize
    # Minimum sublane multiple per dtype: 8 for f32, 16 for bf16, 32 for int8.
    sublane_min = max(8, 32 // itemsize)

    # Lane-dense view: flatten everything and treat it as (rows, 128).
    rows_needed = pl.cdiv(total, _LANE)
    tile = min(row_tile, _round_up(rows_needed, sublane_min))
    tile = _round_up(tile, sublane_min)
    padded_rows = _round_up(rows_needed, tile)
    padded_total = padded_rows * _LANE

    h_flat = hidden.reshape(-1)
    t_flat = types.reshape(-1)
    if padded_total != total:
        pad = padded_total - total
        h_flat = jnp.pad(h_flat, (0, pad))
        t_flat = jnp.pad(t_flat, (0, pad))
    h2d = h_flat.reshape(padded_rows, _LANE)
    t2d = t_flat.reshape(padded_rows, _LANE)

    grid = (padded_rows // tile,)
    spec = pl.BlockSpec((tile, _LANE), lambda i: (i, 0))

    # 3 operands (2 in + 1 out), double-buffered, plus ~2x headroom; keep well
    # under the v7x 64 MiB per-TC VMEM.
    block_bytes = tile * _LANE * itemsize
    vmem_limit = min(max(12 * block_bytes, 16 * 1024 * 1024), 48 * 1024 * 1024)

    out2d = pl.pallas_call(
        _gmf_kernel,
        out_shape=jax.ShapeDtypeStruct((padded_rows, _LANE), dtype),
        grid_spec=pltpu.PrefetchScalarGridSpec(
            num_scalar_prefetch=0,
            grid=grid,
            in_specs=[spec, spec],
            out_specs=spec,
        ),
        compiler_params=pltpu.CompilerParams(
            dimension_semantics=("parallel",),  # shards rows across TCs on v7x
            vmem_limit_bytes=vmem_limit,
        ),
    )(h2d, t2d)

    out_flat = out2d.reshape(-1)
    if padded_total != total:
        out_flat = out_flat[:total]
    return out_flat.reshape(orig_shape)


if __name__ == "__main__":
    key = jax.random.PRNGKey(0)
    k1, k2, k3, k4 = jax.random.split(key, 4)

    # Small shapes consistent with the module: batch=2, seq=8, hidden=32.
    batch, seq, hidden_dim = 2, 8, 32
    hidden = jax.random.normal(k1, (batch, seq, hidden_dim), dtype=jnp.float32)
    types = jax.random.normal(k2, (batch, seq, hidden_dim), dtype=jnp.float32)

    out = gmf_forward(hidden, types)
    out = jax.block_until_ready(out)

    ref = hidden * types
    assert out.shape == ref.shape and out.dtype == ref.dtype
    assert jnp.allclose(out, ref, atol=1e-6, rtol=1e-6)

    # Second check: exercises the multi-step, non-padded grid path.
    h2 = jax.random.normal(k3, (4096, 128), dtype=jnp.float32)
    t2 = jax.random.normal(k4, (4096, 128), dtype=jnp.float32)
    out2 = jax.block_until_ready(gmf_forward(h2, t2))
    assert jnp.allclose(out2, h2 * t2, atol=1e-6, rtol=1e-6)

    print("KERNEL_OK")
</pallas_src>

<mosaic_0001>
module attributes {stable_mosaic.version = 11 : i64} {
  func.func @_gmf_kernel(%arg0: i32, %arg1: memref<8x128xf32, #tpu.memory_space<vmem>>, %arg2: memref<8x128xf32, #tpu.memory_space<vmem>>, %arg3: memref<8x128xf32, #tpu.memory_space<vmem>>) attributes {dimension_semantics = [#tpu.dimension_semantics<parallel>], iteration_bounds = array<i64: 1>, scalar_prefetch = 0 : i64, scratch_operands = 0 : i64, tpu.core_type = #tpu.core_type<tc>, window_params = [{transform_indices = @transform_0, window_bounds = array<i64: 8, 128>}, {transform_indices = @transform_1, window_bounds = array<i64: 8, 128>}, {transform_indices = @transform_2, window_bounds = array<i64: 8, 128>}]} {
    %c0 = arith.constant 0 : index
    %c0_0 = arith.constant 0 : index
    %0 = vector.load %arg1[%c0, %c0_0] : memref<8x128xf32, #tpu.memory_space<vmem>>, vector<8x128xf32>
    %c0_1 = arith.constant 0 : index
    %c0_2 = arith.constant 0 : index
    %1 = vector.load %arg2[%c0_1, %c0_2] : memref<8x128xf32, #tpu.memory_space<vmem>>, vector<8x128xf32>
    %2 = arith.mulf %0, %1 : vector<8x128xf32>
    %c0_3 = arith.constant 0 : index
    %c0_4 = arith.constant 0 : index
    %3 = vector.load %arg3[%c0_3, %c0_4] : memref<8x128xf32, #tpu.memory_space<vmem>>, vector<8x128xf32>
    tpu.vector_store %arg3[%c0_3, %c0_4], %2 {strides = array<i32>} : memref<8x128xf32, #tpu.memory_space<vmem>>, vector<8x128xf32>,
    return
  }
  func.func @transform_0(%arg0: i32) -> (i32, i32) {
    %c0_i32 = arith.constant 0 : i32
    %c0_i32_0 = arith.constant 0 : i32
    return %arg0, %c0_i32 : i32, i32
  }
  func.func @transform_1(%arg0: i32) -> (i32, i32) {
    %c0_i32 = arith.constant 0 : i32
    %c0_i32_0 = arith.constant 0 : i32
    return %arg0, %c0_i32 : i32, i32
  }
  func.func @transform_2(%arg0: i32) -> (i32, i32) {
    %c0_i32 = arith.constant 0 : i32
    %c0_i32_0 = arith.constant 0 : i32
    return %arg0, %c0_i32 : i32, i32
  }
}

</mosaic_0001>

<llo_original>
// kernel: tpu_custom_call.1
$region0: #{tpu_custom_call.1}
  #allocation0 [shape = 'u32[]', space=smem, size = 0x4, offset = 0x4, fixed_abs, tag = 'smem constant byte address 0x4 - core index']
  #allocation1 [shape = 'u32[144,128]{1,0:T(1,128)}', space=vmem, size = 0x12000, scoped, tag = 'internal scratch']
  %s0 = inlined_call_operand.hbm [shape: f32[8,128], index: 0, kind: input, shape index: {}]
  %s1 = inlined_call_operand.hbm [shape: f32[8,128], index: 1, kind: input, shape index: {}]
  %s2 = inlined_call_operand.hbm [shape: f32[8,128], index: 2, kind: output, shape index: {}]
  %s3 = sld [smem:[#allocation0]]
  $region26: #{tpu_custom_call.1} parent=0
    _
  %s5 = ssub.s32 1, %s3
  %s6 = scalar_select 0, %s5, %s3
  $region1: #{tpu_custom_call.1} parent=0
    #allocation2 [shape = 'u8[4096]{0}', space=vmem, size = 0x1000, scoped, tag = 'input window, operand 0, single buffered']
    #allocation3 [shape = 's32[1]{0}', space=sflag, size = 0x4, scoped, tag = 'scoped memory for tpu_custom_call.1']
    #allocation4 [shape = 's32[1]{0}', space=sflag, size = 0x4, scoped, tag = 'scoped memory for tpu_custom_call.1']
    #allocation5 [shape = 'u8[4096]{0}', space=vmem, size = 0x1000, scoped, tag = 'input window, operand 1, single buffered']
    #allocation6 [shape = 's32[1]{0}', space=sflag, size = 0x4, scoped, tag = 'scoped memory for tpu_custom_call.1']
    #allocation7 [shape = 'u8[4096]{0}', space=vmem, size = 0x1000, scoped, tag = 'output window, operand 0, single buffered']
    %7 = vsyncpa [#allocation3], 0
    %8 = vsyncpa [#allocation6], 0
    %9 = vsyncpa [#allocation4], 0
    // Predicated region
    $region2: #{tpu_custom_call.1} parent=1 // pred_check
      _
    $region3: #{tpu_custom_call.1} parent=1 // pred_check_branch
      %11 = sbr.rel (0) target = $region5
    $region4: #{tpu_custom_call.1} parent=1 // pred_region
      %s13 = ssub.s32 128, 128
      %14 = vsyncadd [#allocation3], %s13
      %s16 = sshll.u32 [#allocation2], 4
      %s17 = int_to_ptr.vmem [resolvable:$true] %s16
      %19 = dma.hbm_to_vmem [thread:$0]  %s0, 128, %s17, [#allocation3]
    $region5: #{tpu_custom_call.1} parent=1 // pred_fallthru
      _
    // Predicated region
    $region6: #{tpu_custom_call.1} parent=1 // pred_check
      _
    $region7: #{tpu_custom_call.1} parent=1 // pred_check_branch
      %21 = sbr.rel (0) target = $region9
    $region8: #{tpu_custom_call.1} parent=1 // pred_region
      %s23 = ssub.s32 128, 128
      %24 = vsyncadd [#allocation6], %s23
      %s26 = sshll.u32 [#allocation5], 4
      %s27 = int_to_ptr.vmem [resolvable:$true] %s26
      %29 = dma.hbm_to_vmem [thread:$0]  %s1, 128, %s27, [#allocation6]
    $region9: #{tpu_custom_call.1} parent=1 // pred_fallthru
      _
    // Predicated region
    $region10: #{tpu_custom_call.1} parent=1 // pred_check
      _
    $region11: #{tpu_custom_call.1} parent=1 // pred_check_branch
      %31 = sbr.rel (0) target = $region13
    $region12: #{tpu_custom_call.1} parent=1 // pred_region
      %32 = dma.done [#allocation3], 128
    $region13: #{tpu_custom_call.1} parent=1 // pred_fallthru
      _
    // Predicated region
    $region14: #{tpu_custom_call.1} parent=1 // pred_check
      _
    $region15: #{tpu_custom_call.1} parent=1 // pred_check_branch
      %34 = sbr.rel (0) target = $region17
    $region16: #{tpu_custom_call.1} parent=1 // pred_region
      %35 = dma.done [#allocation6], 128
    $region17: #{tpu_custom_call.1} parent=1 // pred_fallthru
      _
    %v36 = vld [vmem:[#allocation2] sm:$0xff]
    %v37 = vld [vmem:[#allocation5] sm:$0xff]
    %v38 = vmul.f32 %v36, %v37
    %39 = vst [vmem:[#allocation7] sm:$0xff] %v38
    // Predicated region
    $region18: #{tpu_custom_call.1} parent=1 // pred_check
      _
    $region19: #{tpu_custom_call.1} parent=1 // pred_check_branch
      %41 = sbr.rel (0) target = $region21
    $region20: #{tpu_custom_call.1} parent=1 // pred_region
      %s43 = ssub.s32 128, 128
      %44 = vsyncadd [#allocation4], %s43
      %s46 = sshll.u32 [#allocation7], 4
      %s47 = int_to_ptr.vmem [resolvable:$true] %s46
      %49 = dma.vmem_to_hbm [thread:$0]  %s47, 128, %s2, [#allocation4]
    $region21: #{tpu_custom_call.1} parent=1 // pred_fallthru
      _
    // Predicated region
    $region22: #{tpu_custom_call.1} parent=1 // pred_check
      _
    $region23: #{tpu_custom_call.1} parent=1 // pred_check_branch
      %51 = sbr.rel (0) target = $region25
    $region24: #{tpu_custom_call.1} parent=1 // pred_region
      %52 = dma.done [#allocation4], 128
    $region25: #{tpu_custom_call.1} parent=1 // pred_fallthru
      _
    %53 = vsyncpa [#allocation3], 1
    %54 = vsyncpa [#allocation6], 1
    %55 = vsyncpa [#allocation4], 1

</llo_original>
